<compile_context>
chip_gen: v7x
topology: tpu7x:2x2x1
jax: 0.10.0
libtpu: 0.0.40
codegen_flags: <defaults>
</compile_context>

<pallas_src>
import math

import jax
import jax.numpy as jnp
import numpy as np
from jax import lax
from jax.experimental import pallas as pl
from jax.experimental.pallas import tpu as pltpu


def pooling_kernel(x_ref, m_ref, o_ref):
    # x_ref: (tile_rows, r*s*W) VMEM   -- each row = the s input rows of r output rows
    # m_ref: (r*s*W,  r*Wo)    VMEM   -- block-diagonal softmax-weighted tap matrix
    # o_ref: (tile_rows, r*Wo) VMEM
    o_ref[...] = jnp.dot(
        x_ref[...], m_ref[...], preferred_element_type=jnp.float32
    ).astype(o_ref.dtype)


def _pick_row_group(R, Wo, sW, m_budget_bytes=4 << 20):
    """r output rows batched per matmul so the output last dim approaches a
    multiple of 128 lanes, subject to r | R and a size cap on the block-diagonal
    pooling matrix."""
    if Wo % 128 == 0:
        return 1
    r = 128 // math.gcd(Wo, 128)
    while r > 1 and (R % r != 0 or (r * sW) * (r * Wo) * 4 > m_budget_bytes):
        r //= 2
    return max(r, 1)


def _pick_row_tile(Rg, bytes_per_row, budget_bytes=4 << 20):
    """Largest multiple-of-8 divisor of Rg whose input block fits the budget;
    falls back to the full dim (always legal for a BlockSpec)."""
    if Rg < 8 or Rg % 8 != 0:
        return Rg
    best = 8
    for t in range(8, Rg + 1, 8):
        if Rg % t == 0 and t * bytes_per_row <= budget_bytes:
            best = t
    return best


def custom_pooling(x, weights, kernel_size=2, stride=2):
    """x: (B,C,H,W); weights: (1,1,k,k) learnable parameter (pre-softmax)."""
    B, C, H, W = x.shape
    k, s = kernel_size, stride
    if not (1 <= k <= s and H % s == 0 and W % s == 0):
        # TODO(synk): overlapping windows (k > s) / non-divisible H,W need a
        # different row-grouping; the module default (k=2, s=2) is covered.
        raise NotImplementedError("kernel supports k <= stride and H, W divisible by stride")
    Ho, Wo = H // s, W // s
    sW = s * W
    R = B * C * Ho                      # total output rows across batch/channels
    itemsize = jnp.dtype(x.dtype).itemsize

    # ---- lane-density grouping + row tiling (wrapper-side, static) ----
    r = _pick_row_group(R, Wo, sW)
    Rg = R // r                          # rows after grouping r output rows per matmul row
    tile_rows = _pick_row_tile(Rg, r * sW * itemsize)
    n_tiles = Rg // tile_rows

    # ---- parameter preprocessing: softmax + single scatter into the
    #      block-diagonal pooling matrix (no k^2 dense tap constants) ----
    w_flat = jax.nn.softmax(weights.reshape(-1).astype(jnp.float32))   # (k*k,)
    g_i, dy_i, dx_i, j_i = np.meshgrid(
        np.arange(r), np.arange(k), np.arange(k), np.arange(Wo), indexing="ij")
    rows = (g_i * sW + dy_i * W + j_i * s + dx_i).reshape(-1)
    cols = (g_i * Wo + j_i).reshape(-1)
    taps = (dy_i * k + dx_i).reshape(-1)
    m_blk = jnp.zeros((r * sW, r * Wo), jnp.float32).at[rows, cols].set(w_flat[taps])
    # Keep f32 weights exact for f32 inputs; bf16 inputs take native-MXU bf16 taps.
    # TODO(synk): bf16 inputs round the softmaxed taps to bf16 (documented tradeoff).
    m_blk = m_blk.astype(x.dtype)

    # Contiguity-preserving reshape: each row = the s*W inputs of r output rows.
    x2 = x.reshape(Rg, r * sW)

    # Input BlockSpec; deepen buffering only when the pipeline has enough steps
    # (per-tile compute is tiny, so the loop is DMA-latency dominated).
    if n_tiles >= 4:
        in_spec = pl.BlockSpec((tile_rows, r * sW), lambda i: (i, 0),
                               pipeline_mode=pl.Buffered(3))
    else:
        in_spec = pl.BlockSpec((tile_rows, r * sW), lambda i: (i, 0))

    grid_spec = pltpu.PrefetchScalarGridSpec(
        num_scalar_prefetch=0,
        grid=(n_tiles,),
        in_specs=[
            in_spec,
            pl.BlockSpec((r * sW, r * Wo), lambda i: (0, 0)),
        ],
        out_specs=pl.BlockSpec((tile_rows, r * Wo), lambda i: (i, 0)),
    )

    cost = pl.CostEstimate(
        flops=2 * Rg * (r * sW) * (r * Wo),
        transcendentals=0,
        bytes_accessed=(x2.size + m_blk.size + Rg * r * Wo) * itemsize,
    )

    out2 = pl.pallas_call(
        pooling_kernel,
        out_shape=jax.ShapeDtypeStruct((Rg, r * Wo), x.dtype),
        grid_spec=grid_spec,
        cost_estimate=cost,
        compiler_params=pltpu.CompilerParams(
            dimension_semantics=("parallel",),
            # Tiles are budgeted to fit every generation's scoped-VMEM default
            # (double-buffered in+out + pooling matrix < ~14 MB), so no
            # vmem_limit_bytes override is needed.
        ),
    )(x2, m_blk)
    return out2.reshape(B, C, Ho, Wo)


def reference(x, weights, kernel_size=2, stride=2):
    """Pure-JAX reference matching the PyTorch forward."""
    C = x.shape[1]
    k, s = kernel_size, stride
    w = jax.nn.softmax(weights.reshape(-1)).reshape(1, 1, k, k)
    w = jnp.tile(w, (C, 1, 1, 1))                         # (C,1,k,k) depthwise
    return lax.conv_general_dilated(
        x, w, window_strides=(s, s), padding="VALID",
        dimension_numbers=("NCHW", "OIHW", "NCHW"),
        feature_group_count=C,
        precision=jax.lax.Precision.HIGHEST)


if __name__ == "__main__":
    key = jax.random.PRNGKey(0)
    kx, kw = jax.random.split(key, 2)

    B, C, H, W = 2, 4, 16, 16
    kernel_size, stride = 2, 2

    x = jax.random.normal(kx, (B, C, H, W), jnp.float32)
    # Learnable pooling weights (PyTorch init is ones/k**2; perturb so the softmax
    # weighting is non-uniform and the check is meaningful).
    weights = (jnp.ones((1, 1, kernel_size, kernel_size), jnp.float32) / (kernel_size ** 2)
               + 0.5 * jax.random.normal(kw, (1, 1, kernel_size, kernel_size), jnp.float32))

    out = custom_pooling(x, weights, kernel_size, stride)
    out = jax.block_until_ready(out)
    assert out.shape == (B, C, H // stride, W // stride)

    ref = reference(x, weights, kernel_size, stride)
    np.testing.assert_allclose(np.asarray(out), np.asarray(ref), rtol=1e-3, atol=1e-3)
    print("KERNEL_OK")
</pallas_src>

<mosaic_0001>
module attributes {stable_mosaic.version = 11 : i64} {
  func.func @pooling_kernel(%arg0: i32, %arg1: memref<4x512xf32, #tpu.memory_space<vmem>>, %arg2: memref<512x128xf32, #tpu.memory_space<vmem>>, %arg3: memref<4x128xf32, #tpu.memory_space<vmem>>) attributes {dimension_semantics = [#tpu.dimension_semantics<parallel>], iteration_bounds = array<i64: 1>, scalar_prefetch = 0 : i64, scratch_operands = 0 : i64, tpu.core_type = #tpu.core_type<tc>, window_params = [{transform_indices = @transform_0, window_bounds = array<i64: 4, 512>}, {pipeline_mode = #tpu.pipeline_mode<synchronous>, transform_indices = @transform_1, window_bounds = array<i64: 512, 128>}, {transform_indices = @transform_2, window_bounds = array<i64: 4, 128>}]} {
    %c0 = arith.constant 0 : index
    %c0_0 = arith.constant 0 : index
    %0 = vector.load %arg1[%c0, %c0_0] : memref<4x512xf32, #tpu.memory_space<vmem>>, vector<4x512xf32>
    %c0_1 = arith.constant 0 : index
    %c0_2 = arith.constant 0 : index
    %1 = vector.load %arg2[%c0_1, %c0_2] : memref<512x128xf32, #tpu.memory_space<vmem>>, vector<512x128xf32>
    %cst = arith.constant dense<0.000000e+00> : vector<4x128xf32>
    %2 = tpu.matmul %0, %1, %cst {dimension_numbers = #tpu.dot_dimension_numbers<[1], [0], [0], [1], [0, 0, 1, 1], [], []>} : vector<4x512xf32>, vector<512x128xf32>, vector<4x128xf32> -> vector<4x128xf32>
    %c0_3 = arith.constant 0 : index
    %c0_4 = arith.constant 0 : index
    %3 = vector.load %arg3[%c0_3, %c0_4] : memref<4x128xf32, #tpu.memory_space<vmem>>, vector<4x128xf32>
    tpu.vector_store %arg3[%c0_3, %c0_4], %2 {strides = array<i32>} : memref<4x128xf32, #tpu.memory_space<vmem>>, vector<4x128xf32>,
    return
  }
  func.func @transform_0(%arg0: i32) -> (i32, i32) {
    %c0_i32 = arith.constant 0 : i32
    %c0_i32_0 = arith.constant 0 : i32
    return %arg0, %c0_i32 : i32, i32
  }
  func.func @transform_1(%arg0: i32) -> (i32, i32) {
    %c0_i32 = arith.constant 0 : i32
    %c0_i32_0 = arith.constant 0 : i32
    %c0_i32_1 = arith.constant 0 : i32
    return %c0_i32, %c0_i32_0 : i32, i32
  }
  func.func @transform_2(%arg0: i32) -> (i32, i32) {
    %c0_i32 = arith.constant 0 : i32
    %c0_i32_0 = arith.constant 0 : i32
    return %arg0, %c0_i32 : i32, i32
  }
}

</mosaic_0001>

<llo_original>
// kernel: tpu_custom_call.1
$region0: #{tpu_custom_call.1}
  #allocation0 [shape = 'u32[]', space=smem, size = 0x4, offset = 0x4, fixed_abs, tag = 'smem constant byte address 0x4 - core index']
  #allocation1 [shape = 'u32[144,128]{1,0:T(1,128)}', space=vmem, size = 0x12000, scoped, tag = 'internal scratch']
  %s0 = inlined_call_operand.hbm [shape: f32[4,512], index: 0, kind: input, shape index: {}]
  %s1 = inlined_call_operand.hbm [shape: f32[512,128], index: 1, kind: input, shape index: {}]
  %s2 = inlined_call_operand.hbm [shape: f32[4,128], index: 2, kind: output, shape index: {}]
  %s3 = sld [smem:[#allocation0]]
  $region26: #{tpu_custom_call.1} parent=0
    _
  %s5 = ssub.s32 1, %s3
  %s6 = scalar_select 0, %s5, %s3
  $region1: #{tpu_custom_call.1} parent=0
    #allocation2 [shape = 'u8[8192]{0}', space=vmem, size = 0x2000, scoped, tag = 'input window, operand 0, single buffered']
    #allocation3 [shape = 's32[1]{0}', space=sflag, size = 0x4, scoped, tag = 'scoped memory for tpu_custom_call.1']
    #allocation4 [shape = 's32[1]{0}', space=sflag, size = 0x4, scoped, tag = 'scoped memory for tpu_custom_call.1']
    #allocation5 [shape = 'u8[262144]{0}', space=vmem, size = 0x40000, scoped, tag = 'input window, operand 1, single buffered']
    #allocation6 [shape = 's32[1]{0}', space=sflag, size = 0x4, scoped, tag = 'scoped memory for tpu_custom_call.1']
    #allocation7 [shape = 'u8[2048]{0}', space=vmem, size = 0x800, scoped, tag = 'output window, operand 0, single buffered']
    %7 = vsyncpa [#allocation3], 0
    %8 = vsyncpa [#allocation6], 0
    %9 = vsyncpa [#allocation4], 0
    // Predicated region
    $region2: #{tpu_custom_call.1} parent=1 // pred_check
      _
    $region3: #{tpu_custom_call.1} parent=1 // pred_check_branch
      %11 = sbr.rel (0) target = $region5
    $region4: #{tpu_custom_call.1} parent=1 // pred_region
      %s13 = ssub.s32 256, 256
      %14 = vsyncadd [#allocation3], %s13
      %s16 = sshll.u32 [#allocation2], 4
      %s17 = int_to_ptr.vmem [resolvable:$true] %s16
      %19 = dma.hbm_to_vmem [thread:$0]  %s0, 256, %s17, [#allocation3]
    $region5: #{tpu_custom_call.1} parent=1 // pred_fallthru
      _
    // Predicated region
    $region6: #{tpu_custom_call.1} parent=1 // pred_check
      _
    $region7: #{tpu_custom_call.1} parent=1 // pred_check_branch
      %21 = sbr.rel (0) target = $region9
    $region8: #{tpu_custom_call.1} parent=1 // pred_region
      %s23 = ssub.s32 8192, 8192
      %24 = vsyncadd [#allocation6], %s23
      %s25 = sshll.u32 [#allocation5], 4
      %s26 = int_to_ptr.vmem [resolvable:$true] %s25
      %31 = dma.hbm_to_vmem [thread:$0]  %s1, 8192, %s26, [#allocation6], 128, 128, 8
    $region9: #{tpu_custom_call.1} parent=1 // pred_fallthru
      _
    // Predicated region
    $region10: #{tpu_custom_call.1} parent=1 // pred_check
      _
    $region11: #{tpu_custom_call.1} parent=1 // pred_check_branch
      %33 = sbr.rel (0) target = $region13
    $region12: #{tpu_custom_call.1} parent=1 // pred_region
      %34 = dma.done [#allocation3], 256
    $region13: #{tpu_custom_call.1} parent=1 // pred_fallthru
      _
    // Predicated region
    $region14: #{tpu_custom_call.1} parent=1 // pred_check
      _
    $region15: #{tpu_custom_call.1} parent=1 // pred_check_branch
      %36 = sbr.rel (0) target = $region17
    $region16: #{tpu_custom_call.1} parent=1 // pred_region
      %37 = dma.done [#allocation6], 8192
    $region17: #{tpu_custom_call.1} parent=1 // pred_fallthru
      _
    %v38 = vld [vmem:[#allocation2] sm:$0xff]
    %v39 = vld [vmem:[#allocation2 + $0x8] sm:$0xff]
    %v40 = vld [vmem:[#allocation5] sm:$0xff]
    %v41 = vld [vmem:[#allocation5 + $0x8] sm:$0xff]
    %v42 = vld [vmem:[#allocation5 + $0x10] sm:$0xff]
    %v43 = vld [vmem:[#allocation5 + $0x18] sm:$0xff]
    %v44 = vld [vmem:[#allocation5 + $0x20] sm:$0xff]
    %v45 = vld [vmem:[#allocation5 + $0x28] sm:$0xff]
    %v46 = vld [vmem:[#allocation5 + $0x30] sm:$0xff]
    %v47 = vld [vmem:[#allocation5 + $0x38] sm:$0xff]
    %v48 = vld [vmem:[#allocation5 + $0x40] sm:$0xff]
    %v49 = vld [vmem:[#allocation5 + $0x48] sm:$0xff]
    %v50 = vld [vmem:[#allocation5 + $0x50] sm:$0xff]
    %v51 = vld [vmem:[#allocation5 + $0x58] sm:$0xff]
    %v52 = vld [vmem:[#allocation5 + $0x60] sm:$0xff]
    %v53 = vld [vmem:[#allocation5 + $0x68] sm:$0xff]
    %v54 = vld [vmem:[#allocation5 + $0x70] sm:$0xff]
    %v55 = vld [vmem:[#allocation5 + $0x78] sm:$0xff]
    %v56 = vld [vmem:[#allocation5 + $0x80] sm:$0xff]
    %v57 = vld [vmem:[#allocation5 + $0x88] sm:$0xff]
    %v58 = vld [vmem:[#allocation5 + $0x90] sm:$0xff]
    %v59 = vld [vmem:[#allocation5 + $0x98] sm:$0xff]
    %v60 = vld [vmem:[#allocation5 + $0xa0] sm:$0xff]
    %v61 = vld [vmem:[#allocation5 + $0xa8] sm:$0xff]
    %v62 = vld [vmem:[#allocation5 + $0xb0] sm:$0xff]
    %v63 = vld [vmem:[#allocation5 + $0xb8] sm:$0xff]
    %v64 = vld [vmem:[#allocation5 + $0xc0] sm:$0xff]
    %v65 = vld [vmem:[#allocation5 + $0xc8] sm:$0xff]
    %v66 = vld [vmem:[#allocation5 + $0xd0] sm:$0xff]
    %v67 = vld [vmem:[#allocation5 + $0xd8] sm:$0xff]
    %v68 = vld [vmem:[#allocation5 + $0xe0] sm:$0xff]
    %v69 = vld [vmem:[#allocation5 + $0xe8] sm:$0xff]
    %v70 = vld [vmem:[#allocation5 + $0xf0] sm:$0xff]
    %v71 = vld [vmem:[#allocation5 + $0xf8] sm:$0xff]
    %v72 = vld [vmem:[#allocation5 + $0x100] sm:$0xff]
    %v73 = vld [vmem:[#allocation5 + $0x108] sm:$0xff]
    %v74 = vld [vmem:[#allocation5 + $0x110] sm:$0xff]
    %v75 = vld [vmem:[#allocation5 + $0x118] sm:$0xff]
    %v76 = vld [vmem:[#allocation5 + $0x120] sm:$0xff]
    %v77 = vld [vmem:[#allocation5 + $0x128] sm:$0xff]
    %v78 = vld [vmem:[#allocation5 + $0x130] sm:$0xff]
    %v79 = vld [vmem:[#allocation5 + $0x138] sm:$0xff]
    %v80 = vld [vmem:[#allocation5 + $0x140] sm:$0xff]
    %v81 = vld [vmem:[#allocation5 + $0x148] sm:$0xff]
    %v82 = vld [vmem:[#allocation5 + $0x150] sm:$0xff]
    %v83 = vld [vmem:[#allocation5 + $0x158] sm:$0xff]
    %v84 = vld [vmem:[#allocation5 + $0x160] sm:$0xff]
    %v85 = vld [vmem:[#allocation5 + $0x168] sm:$0xff]
    %v86 = vld [vmem:[#allocation5 + $0x170] sm:$0xff]
    %v87 = vld [vmem:[#allocation5 + $0x178] sm:$0xff]
    %v88 = vld [vmem:[#allocation5 + $0x180] sm:$0xff]
    %v89 = vld [vmem:[#allocation5 + $0x188] sm:$0xff]
    %v90 = vld [vmem:[#allocation5 + $0x190] sm:$0xff]
    %v91 = vld [vmem:[#allocation5 + $0x198] sm:$0xff]
    %v92 = vld [vmem:[#allocation5 + $0x1a0] sm:$0xff]
    %v93 = vld [vmem:[#allocation5 + $0x1a8] sm:$0xff]
    %v94 = vld [vmem:[#allocation5 + $0x1b0] sm:$0xff]
    %v95 = vld [vmem:[#allocation5 + $0x1b8] sm:$0xff]
    %v96 = vld [vmem:[#allocation5 + $0x1c0] sm:$0xff]
    %v97 = vld [vmem:[#allocation5 + $0x1c8] sm:$0xff]
    %v98 = vld [vmem:[#allocation5 + $0x1d0] sm:$0xff]
    %v99 = vld [vmem:[#allocation5 + $0x1d8] sm:$0xff]
    %v100 = vld [vmem:[#allocation5 + $0x1e0] sm:$0xff]
    %v101 = vld [vmem:[#allocation5 + $0x1e8] sm:$0xff]
    %v102 = vld [vmem:[#allocation5 + $0x1f0] sm:$0xff]
    %v103 = vld [vmem:[#allocation5 + $0x1f8] sm:$0xff]
    %v106 = vcombine.high %v38, %v38
    %v107 = vcombine.high %v39, %v39
    %110 = vmatprep.subr.mxu0 0.0
    %111 = vmatpush1.msra.mxu0 %v40
    %112 = vmatprep.subr.mxu0 0.0
    %113 = vmatpush1.msra.mxu0 %v41
    %114 = vmatprep.subr.mxu0 0.0
    %115 = vmatpush1.msra.mxu0 %v42
    %116 = vmatprep.subr.mxu0 0.0
    %117 = vmatpush1.msra.mxu0 %v43
    %118 = vmatprep.subr.mxu0 0.0
    %119 = vmatpush1.msra.mxu0 %v44
    %120 = vmatprep.subr.mxu0 0.0
    %121 = vmatpush1.msra.mxu0 %v45
    %122 = vmatprep.subr.mxu0 0.0
    %123 = vmatpush1.msra.mxu0 %v46
    %124 = vmatprep.subr.mxu0 0.0
    %125 = vmatpush1.msra.mxu0 %v47
    %126 = vmatprep.subr.mxu0 0.0
    %127 = vmatpush1.msra.mxu0 %v48
    %128 = vmatprep.subr.mxu0 0.0
    %129 = vmatpush1.msra.mxu0 %v49
    %130 = vmatprep.subr.mxu0 0.0
    %131 = vmatpush1.msra.mxu0 %v50
    %132 = vmatprep.subr.mxu0 0.0
    %133 = vmatpush1.msra.mxu0 %v51
    %134 = vmatprep.subr.mxu0 0.0
    %135 = vmatpush1.msra.mxu0 %v52
    %136 = vmatprep.subr.mxu0 0.0
    %137 = vmatpush1.msra.mxu0 %v53
    %138 = vmatprep.subr.mxu0 0.0
    %139 = vmatpush1.msra.mxu0 %v54
    %140 = vmatprep.subr.mxu0 0.0
    %141 = vmatpush1.msra.mxu0 %v55
    %142 = vmatprep.subr.mxu0 0.0
    %143 = vmatpush1.msra.mxu0 %v56
    %144 = vmatprep.subr.mxu0 0.0
    %145 = vmatpush1.msra.mxu0 %v57
    %146 = vmatprep.subr.mxu0 0.0
    %147 = vmatpush1.msra.mxu0 %v58
    %148 = vmatprep.subr.mxu0 0.0
    %149 = vmatpush1.msra.mxu0 %v59
    %150 = vmatprep.subr.mxu0 0.0
    %151 = vmatpush1.msra.mxu0 %v60
    %152 = vmatprep.subr.mxu0 0.0
    %153 = vmatpush1.msra.mxu0 %v61
    %154 = vmatprep.subr.mxu0 0.0
    %155 = vmatpush1.msra.mxu0 %v62
    %156 = vmatprep.subr.mxu0 0.0
    %157 = vmatpush1.msra.mxu0 %v63
    %158 = vmatprep.subr.mxu0 0.0
    %159 = vmatpush1.msra.mxu0 %v64
    %160 = vmatprep.subr.mxu0 0.0
    %161 = vmatpush1.msra.mxu0 %v65
    %162 = vmatprep.subr.mxu0 0.0
    %163 = vmatpush1.msra.mxu0 %v66
    %164 = vmatprep.subr.mxu0 0.0
    %165 = vmatpush1.msra.mxu0 %v67
    %166 = vmatprep.subr.mxu0 0.0
    %167 = vmatpush1.msra.mxu0 %v68
    %168 = vmatprep.subr.mxu0 0.0
    %169 = vmatpush1.msra.mxu0 %v69
    %170 = vmatprep.subr.mxu0 0.0
    %171 = vmatpush1.msra.mxu0 %v70
    %172 = vmatprep.subr.mxu0 0.0
    %173 = vmatpush1.msra.mxu0 %v71
    %174 = vmatprep.mubr.f32.mxu0 %v106
    %175 = vmatmul.mubr.f32.gmra.mrb[0].mxu0 %v38
    %v176 = vpop.f32.mrb[0].mxu0
    %v177 = vadd.f32 0.0, %v176
    %v178 = vpop.f32.mrb[0].mxu0
    %179 = vdwg.mxu0
    %180 = vmatprep.subr.mxu0 0.0
    %181 = vmatpush1.msra.mxu0 %v72
    %182 = vmatprep.subr.mxu0 0.0
    %183 = vmatpush1.msra.mxu0 %v73
    %184 = vmatprep.subr.mxu0 0.0
    %185 = vmatpush1.msra.mxu0 %v74
    %186 = vmatprep.subr.mxu0 0.0
    %187 = vmatpush1.msra.mxu0 %v75
    %188 = vmatprep.subr.mxu0 0.0
    %189 = vmatpush1.msra.mxu0 %v76
    %190 = vmatprep.subr.mxu0 0.0
    %191 = vmatpush1.msra.mxu0 %v77
    %192 = vmatprep.subr.mxu0 0.0
    %193 = vmatpush1.msra.mxu0 %v78
    %194 = vmatprep.subr.mxu0 0.0
    %195 = vmatpush1.msra.mxu0 %v79
    %196 = vmatprep.subr.mxu0 0.0
    %197 = vmatpush1.msra.mxu0 %v80
    %198 = vmatprep.subr.mxu0 0.0
    %199 = vmatpush1.msra.mxu0 %v81
    %200 = vmatprep.subr.mxu0 0.0
    %201 = vmatpush1.msra.mxu0 %v82
    %202 = vmatprep.subr.mxu0 0.0
    %203 = vmatpush1.msra.mxu0 %v83
    %204 = vmatprep.subr.mxu0 0.0
    %205 = vmatpush1.msra.mxu0 %v84
    %206 = vmatprep.subr.mxu0 0.0
    %207 = vmatpush1.msra.mxu0 %v85
    %208 = vmatprep.subr.mxu0 0.0
    %209 = vmatpush1.msra.mxu0 %v86
    %210 = vmatprep.subr.mxu0 0.0
    %211 = vmatpush1.msra.mxu0 %v87
    %212 = vmatprep.subr.mxu0 0.0
    %213 = vmatpush1.msra.mxu0 %v88
    %214 = vmatprep.subr.mxu0 0.0
    %215 = vmatpush1.msra.mxu0 %v89
    %216 = vmatprep.subr.mxu0 0.0
    %217 = vmatpush1.msra.mxu0 %v90
    %218 = vmatprep.subr.mxu0 0.0
    %219 = vmatpush1.msra.mxu0 %v91
    %220 = vmatprep.subr.mxu0 0.0
    %221 = vmatpush1.msra.mxu0 %v92
    %222 = vmatprep.subr.mxu0 0.0
    %223 = vmatpush1.msra.mxu0 %v93
    %224 = vmatprep.subr.mxu0 0.0
    %225 = vmatpush1.msra.mxu0 %v94
    %226 = vmatprep.subr.mxu0 0.0
    %227 = vmatpush1.msra.mxu0 %v95
    %228 = vmatprep.subr.mxu0 0.0
    %229 = vmatpush1.msra.mxu0 %v96
    %230 = vmatprep.subr.mxu0 0.0
    %231 = vmatpush1.msra.mxu0 %v97
    %232 = vmatprep.subr.mxu0 0.0
    %233 = vmatpush1.msra.mxu0 %v98
    %234 = vmatprep.subr.mxu0 0.0
    %235 = vmatpush1.msra.mxu0 %v99
    %236 = vmatprep.subr.mxu0 0.0
    %237 = vmatpush1.msra.mxu0 %v100
    %238 = vmatprep.subr.mxu0 0.0
    %239 = vmatpush1.msra.mxu0 %v101
    %240 = vmatprep.subr.mxu0 0.0
    %241 = vmatpush1.msra.mxu0 %v102
    %242 = vmatprep.subr.mxu0 0.0
    %243 = vmatpush1.msra.mxu0 %v103
    %244 = vmatprep.mubr.f32.mxu0 %v107
    %245 = vmatmul.mubr.f32.gmra.mrb[0].mxu0 %v39
    %v246 = vpop.f32.mrb[0].mxu0
    %v247 = vadd.f32 %v177, %v246
    %v248 = vpop.f32.mrb[0].mxu0
    %249 = vdwg.mxu0
    %250 = vst [vmem:[#allocation7] sm:$0xf] %v247
    // Predicated region
    $region18: #{tpu_custom_call.1} parent=1 // pred_check
      _
    $region19: #{tpu_custom_call.1} parent=1 // pred_check_branch
      %252 = sbr.rel (0) target = $region21
    $region20: #{tpu_custom_call.1} parent=1 // pred_region
      %s254 = ssub.s32 64, 64
      %255 = vsyncadd [#allocation4], %s254
      %s257 = sshll.u32 [#allocation7], 4
      %s258 = int_to_ptr.vmem [resolvable:$true] %s257
      %260 = dma.vmem_to_hbm [thread:$0]  %s258, 64, %s2, [#allocation4]
    $region21: #{tpu_custom_call.1} parent=1 // pred_fallthru
      _
    // Predicated region
    $region22: #{tpu_custom_call.1} parent=1 // pred_check
      _
    $region23: #{tpu_custom_call.1} parent=1 // pred_check_branch
      %262 = sbr.rel (0) target = $region25
    $region24: #{tpu_custom_call.1} parent=1 // pred_region
      %263 = dma.done [#allocation4], 64
    $region25: #{tpu_custom_call.1} parent=1 // pred_fallthru
      _
    %264 = vsyncpa [#allocation3], 1
    %265 = vsyncpa [#allocation6], 1
    %266 = vsyncpa [#allocation4], 1

</llo_original>
